<compile_context>
chip_gen: v7x
topology: tpu7x:2x2x1
jax: 0.10.0
libtpu: 0.0.40
codegen_flags: <defaults>
</compile_context>

<pallas_src>
import functools

import jax
import jax.numpy as jnp
import numpy as np
from jax.experimental import pallas as pl
from jax.experimental.pallas import tpu as pltpu

LANE = 128


def _round_up(x, m):
    return ((x + m - 1) // m) * m


def _pad2(x, shape):
    return jnp.pad(x, ((0, shape[0] - x.shape[0]), (0, shape[1] - x.shape[1])))


# ----------------------------------------------------------------------------
# Host-side preprocessing: per row tile, the sorted list of nonzero (T,T)
# adjacency column blocks (this mirrors GNN-Advisor's inputInfo preprocessing).
# ----------------------------------------------------------------------------
def _block_nonzeros(a_f32_p, tile):
    n_p = a_f32_p.shape[0]
    rt = n_p // tile
    blk = np.asarray(jax.device_get(
        jnp.any(a_f32_p.reshape(rt, tile, rt, tile) != 0.0, axis=(1, 3))))
    counts = blk.sum(axis=1).astype(np.int32)
    max_blocks = max(1, int(counts.max()))
    cols = np.zeros((rt, max_blocks), dtype=np.int32)
    for i in range(rt):
        nz = np.nonzero(blk[i])[0].astype(np.int32)
        if nz.size:
            cols[i, :nz.size] = nz
            # Repeat the last valid block index for padded steps: the A block
            # index does not change, so Pallas skips the redundant DMA.
            cols[i, nz.size:] = nz[-1]
    return jnp.asarray(cols.reshape(-1)), jnp.asarray(counts), max_blocks


# ----------------------------------------------------------------------------
# Generic block-sparse aggregation + fused epilogue:
#   out[i*T:(i+1)*T] = epilogue( sum_{k nonzero} A[i, col(i,k)] @ M[col(i,k)] )
# ----------------------------------------------------------------------------
def _agg_kernel(cols_ref, cnt_ref, a_ref, m_ref, *rest,
                tile, max_blocks, m_resident, epilogue):
    *extra_refs, o_ref, acc_ref = rest
    i = pl.program_id(0)
    k = pl.program_id(1)

    @pl.when(k == 0)
    def _():
        acc_ref[...] = jnp.zeros_like(acc_ref)

    @pl.when(k < cnt_ref[i])
    def _():
        if m_resident:
            col = cols_ref[i * max_blocks + k]
            start = pl.multiple_of(col * tile, LANE)
            m_blk = m_ref[pl.ds(start, tile), :]
        else:
            m_blk = m_ref[...]
        acc_ref[...] += jnp.dot(a_ref[...], m_blk,
                                preferred_element_type=jnp.float32)

    @pl.when(k == pl.num_programs(1) - 1)
    def _():
        o_ref[...] = epilogue(acc_ref[...], extra_refs).astype(o_ref.dtype)


def _sparse_agg(a_p, m_p, extras, extra_specs, *, tile, cols, counts, max_blocks,
                epilogue, acc_width, out_width, out_dtype, resident_bytes_limit):
    n_p = a_p.shape[0]
    f_m = m_p.shape[1]
    row_tiles = n_p // tile
    m_resident = n_p * f_m * m_p.dtype.itemsize <= resident_bytes_limit

    if m_resident:
        # One-time DMA: constant block index -> never re-fetched.
        m_spec = pl.BlockSpec((n_p, f_m), lambda i, k, cols_r, cnt_r: (0, 0))
    else:
        m_spec = pl.BlockSpec(
            (tile, f_m),
            lambda i, k, cols_r, cnt_r: (cols_r[i * max_blocks + k], 0))

    kernel = functools.partial(_agg_kernel, tile=tile, max_blocks=max_blocks,
                               m_resident=m_resident, epilogue=epilogue)
    return pl.pallas_call(
        kernel,
        out_shape=jax.ShapeDtypeStruct((n_p, out_width), out_dtype),
        grid_spec=pltpu.PrefetchScalarGridSpec(
            num_scalar_prefetch=2,
            grid=(row_tiles, max_blocks),
            in_specs=[
                pl.BlockSpec(
                    (tile, tile),
                    lambda i, k, cols_r, cnt_r: (i, cols_r[i * max_blocks + k])),
                m_spec,
                *extra_specs,
            ],
            out_specs=pl.BlockSpec((tile, out_width),
                                   lambda i, k, cols_r, cnt_r: (i, 0)),
            scratch_shapes=[pltpu.VMEM((tile, acc_width), jnp.float32)],
        ),
        compiler_params=pltpu.CompilerParams(
            dimension_semantics=("parallel", "arbitrary")),
    )(cols, counts, a_p, m_p, *extras)


# ----------------------------------------------------------------------------
# Row-tiled feature transform (used when f_in_p > f_hid_p): XW0 = X @ W0
# ----------------------------------------------------------------------------
def _transform_kernel(x_ref, w_ref, o_ref):
    o_ref[...] = jnp.dot(x_ref[...], w_ref[...],
                         preferred_element_type=jnp.float32).astype(o_ref.dtype)


def _transform(x, w, *, tile):
    n_p, f_in_p = x.shape
    f_out_p = w.shape[1]
    return pl.pallas_call(
        _transform_kernel,
        out_shape=jax.ShapeDtypeStruct((n_p, f_out_p), jnp.bfloat16),
        grid_spec=pltpu.PrefetchScalarGridSpec(
            num_scalar_prefetch=0,
            grid=(n_p // tile,),
            in_specs=[pl.BlockSpec((tile, f_in_p), lambda i: (i, 0)),
                      pl.BlockSpec((f_in_p, f_out_p), lambda i: (0, 0))],
            out_specs=pl.BlockSpec((tile, f_out_p), lambda i: (i, 0))),
        compiler_params=pltpu.CompilerParams(dimension_semantics=("parallel",)),
    )(x, w)


# ----------------------------------------------------------------------------
# Full module forward
# ----------------------------------------------------------------------------
def gnna_gcn_forward(a_norm, input_feature, params, *, tile=1024,
                     resident_bytes_limit=2 * 1024 * 1024):
    """a_norm: [N,N] normalized adjacency; input_feature: [N, in_feats].

    tile: aggregation tile (multiple of 128).  1024 (~10 MiB VMEM incl. double
    buffering) fits v5e/v6e/v7x default scoped VMEM; raise vmem_limit_bytes only
    if you push to 2048 on v5e.  The node dim is padded UP to a multiple of the
    tile (never shrink the tile to divide N); if that would leave one row tile,
    the tile is halved so v7x's second TensorCore still gets work.
    """
    n = a_norm.shape[0]
    in_feats = input_feature.shape[1]
    n_hidden = params["w0"].shape[1]
    out_feats = params["w1"].shape[1]

    f_in_p = _round_up(in_feats, LANE)
    f_hid_p = _round_up(n_hidden, LANE)
    f_out_p = _round_up(out_feats, LANE)

    t = max(LANE, (min(tile, _round_up(n, LANE)) // LANE) * LANE)
    while t > LANE and _round_up(n, t) // t < 2:
        t = max(LANE, ((t // 2) // LANE) * LANE)
    n_p = _round_up(n, t)

    a_f32_p = _pad2(a_norm.astype(jnp.float32), (n_p, n_p))
    cols, counts, max_blocks = _block_nonzeros(a_f32_p, t)
    a_p = a_f32_p.astype(jnp.bfloat16)

    x_p = _pad2(input_feature.astype(jnp.float32), (n_p, f_in_p)).astype(jnp.bfloat16)
    w0_p = _pad2(params["w0"].astype(jnp.float32), (f_in_p, f_hid_p)).astype(jnp.bfloat16)
    b0_p = _pad2(params["b0"].reshape(1, -1).astype(jnp.float32), (1, f_hid_p))
    w1_p = _pad2(params["w1"].astype(jnp.float32), (f_hid_p, f_out_p)).astype(jnp.bfloat16)
    b1_p = _pad2(params["b1"].reshape(1, -1).astype(jnp.float32), (1, f_out_p))

    # ---- Layer 1: choose association from padded dims ----
    if f_in_p <= f_hid_p:
        # Aggregate X first:  G = relu((A @ X) @ W0 + b0) @ W1
        m1 = x_p
        acc_w1 = f_in_p
        extras1 = (w0_p, b0_p, w1_p)
        specs1 = [
            pl.BlockSpec((f_in_p, f_hid_p), lambda i, k, _c, _n: (0, 0)),
            pl.BlockSpec((1, f_hid_p), lambda i, k, _c, _n: (0, 0)),
            pl.BlockSpec((f_hid_p, f_out_p), lambda i, k, _c, _n: (0, 0)),
        ]

        def layer1_epilogue(acc, refs):
            w0_ref, b0_ref, w1_ref = refs
            h = jnp.dot(acc.astype(jnp.bfloat16), w0_ref[...],
                        preferred_element_type=jnp.float32) + b0_ref[...]
            h = jnp.maximum(h, 0.0)
            return jnp.dot(h.astype(jnp.bfloat16), w1_ref[...],
                           preferred_element_type=jnp.float32)
    else:
        # Pre-transform (narrower aggregation):  G = relu(A @ (X @ W0) + b0) @ W1
        m1 = _transform(x_p, w0_p, tile=t)
        acc_w1 = f_hid_p
        extras1 = (b0_p, w1_p)
        specs1 = [
            pl.BlockSpec((1, f_hid_p), lambda i, k, _c, _n: (0, 0)),
            pl.BlockSpec((f_hid_p, f_out_p), lambda i, k, _c, _n: (0, 0)),
        ]

        def layer1_epilogue(acc, refs):
            b0_ref, w1_ref = refs
            h = jnp.maximum(acc + b0_ref[...], 0.0)
            return jnp.dot(h.astype(jnp.bfloat16), w1_ref[...],
                           preferred_element_type=jnp.float32)

    g = _sparse_agg(a_p, m1, extras1, specs1, tile=t, cols=cols, counts=counts,
                    max_blocks=max_blocks, epilogue=layer1_epilogue,
                    acc_width=acc_w1, out_width=f_out_p, out_dtype=jnp.bfloat16,
                    resident_bytes_limit=resident_bytes_limit)

    # ---- Layer 2: out = log_softmax(A @ G + b1) (masked over padded lanes) ----
    def layer2_epilogue(acc, refs):
        (b1_ref,) = refs
        z = acc + b1_ref[...]
        lane = jax.lax.broadcasted_iota(jnp.int32, z.shape, 1)
        valid = lane < out_feats
        m = jnp.max(jnp.where(valid, z, -jnp.inf), axis=1, keepdims=True)
        shifted = z - m
        sumexp = jnp.sum(jnp.where(valid, jnp.exp(shifted), 0.0),
                         axis=1, keepdims=True)
        return shifted - jnp.log(sumexp)

    z_ls = _sparse_agg(
        a_p, g, (b1_p,),
        [pl.BlockSpec((1, f_out_p), lambda i, k, _c, _n: (0, 0))],
        tile=t, cols=cols, counts=counts, max_blocks=max_blocks,
        epilogue=layer2_epilogue, acc_width=f_out_p, out_width=f_out_p,
        out_dtype=jnp.float32, resident_bytes_limit=resident_bytes_limit)

    out = z_ls[:n, :out_feats]
    # TODO(synk): spmm_time1/spmm_time2 are host-side timers in the original module.
    return out, jnp.float32(0.0), jnp.float32(0.0)


# ----------------------------------------------------------------------------
# Reference (plain JAX, f32) for sanity check
# ----------------------------------------------------------------------------
def reference_forward(a_norm, x, params):
    h = jnp.maximum(a_norm @ (x @ params["w0"]) + params["b0"], 0.0)
    z = a_norm @ (h @ params["w1"]) + params["b1"]
    return jax.nn.log_softmax(z, axis=1)


if __name__ == "__main__":
    key = jax.random.PRNGKey(0)

    def make_params(k, in_feats, n_hidden, out_feats):
        k_w0, k_b0, k_w1, k_b1 = jax.random.split(k, 4)
        return {
            "w0": jax.random.normal(k_w0, (in_feats, n_hidden), jnp.float32) * 0.1,
            "b0": jax.random.normal(k_b0, (1, n_hidden), jnp.float32) * 0.1,
            "w1": jax.random.normal(k_w1, (n_hidden, out_feats), jnp.float32) * 0.1,
            "b1": jax.random.normal(k_b1, (1, out_feats), jnp.float32) * 0.1,
        }

    def normalize(adj):
        deg = jnp.sum(adj, axis=1)
        d = 1.0 / jnp.sqrt(deg)
        return adj * d[:, None] * d[None, :]

    k_test1, k_test2 = jax.random.split(key)

    # Test 1: N=200 (node padding), f_in <= f_hid -> aggregate-X-first path;
    # dense-ish random graph so every adjacency block is nonzero.
    ka, kx, kp = jax.random.split(k_test1, 3)
    N, in_feats, n_hidden, out_feats = 200, 16, 32, 8
    x = jax.random.normal(kx, (N, in_feats), jnp.float32)
    edges = (jax.random.uniform(ka, (N, N)) < 0.1).astype(jnp.float32)
    adj = jnp.minimum(jnp.maximum(edges, edges.T) + jnp.eye(N), 1.0)
    a_norm = normalize(adj)
    params = make_params(kp, in_feats, n_hidden, out_feats)
    out, _, _ = gnna_gcn_forward(a_norm, x, params)
    out = jax.block_until_ready(out)
    ref = reference_forward(a_norm, x, params)
    assert out.shape == (N, out_feats)
    assert jnp.allclose(out, ref, atol=2e-2, rtol=2e-2), "test1 mismatch vs reference"

    # Test 2: two disconnected 128-aligned clusters -> some (T,T) adjacency
    # blocks are exactly zero (exercises the block-sparse skip), and
    # f_in > f_hid -> pre-transform path.
    ka, kx, kp = jax.random.split(k_test2, 3)
    N, in_feats, n_hidden, out_feats = 384, 300, 16, 8
    x = jax.random.normal(kx, (N, in_feats), jnp.float32)
    cluster = jnp.arange(N) < 128
    same = (cluster[:, None] == cluster[None, :]).astype(jnp.float32)
    edges = (jax.random.uniform(ka, (N, N)) < 0.05).astype(jnp.float32) * same
    adj = jnp.minimum(jnp.maximum(edges, edges.T) + jnp.eye(N), 1.0)
    a_norm = normalize(adj)
    params = make_params(kp, in_feats, n_hidden, out_feats)
    out, _, _ = gnna_gcn_forward(a_norm, x, params)
    out = jax.block_until_ready(out)
    ref = reference_forward(a_norm, x, params)
    assert out.shape == (N, out_feats)
    assert jnp.allclose(out, ref, atol=2e-2, rtol=2e-2), "test2 mismatch vs reference"

    print("KERNEL_OK")
</pallas_src>

<mosaic_0001>
module attributes {stable_mosaic.version = 11 : i64} {
  func.func @_agg_kernel(%arg0: i32, %arg1: i32, %arg2: memref<4xi32, #tpu.memory_space<smem>>, %arg3: memref<2xi32, #tpu.memory_space<smem>>, %arg4: memref<128x128xbf16, #tpu.memory_space<vmem>>, %arg5: memref<256x128xbf16, #tpu.memory_space<vmem>>, %arg6: memref<128x128xbf16, #tpu.memory_space<vmem>>, %arg7: memref<1x128xf32, #tpu.memory_space<vmem>>, %arg8: memref<128x128xbf16, #tpu.memory_space<vmem>>, %arg9: memref<128x128xbf16, #tpu.memory_space<vmem>>, %arg10: memref<128x128xf32, #tpu.memory_space<vmem>>) attributes {dimension_semantics = [#tpu.dimension_semantics<parallel>, #tpu.dimension_semantics<arbitrary>], iteration_bounds = array<i64: 2, 2>, scalar_prefetch = 2 : i64, scratch_operands = 1 : i64, tpu.core_type = #tpu.core_type<tc>, window_params = [{transform_indices = @transform_0, window_bounds = array<i64: 128, 128>}, {pipeline_mode = #tpu.pipeline_mode<synchronous>, transform_indices = @transform_1, window_bounds = array<i64: 256, 128>}, {pipeline_mode = #tpu.pipeline_mode<synchronous>, transform_indices = @transform_2, window_bounds = array<i64: 128, 128>}, {pipeline_mode = #tpu.pipeline_mode<synchronous>, transform_indices = @transform_3, window_bounds = array<i64: 1, 128>}, {pipeline_mode = #tpu.pipeline_mode<synchronous>, transform_indices = @transform_4, window_bounds = array<i64: 128, 128>}, {transform_indices = @transform_5, window_bounds = array<i64: 128, 128>}]} {
    %c0_i32 = arith.constant 0 : i32
    %0 = arith.cmpi eq, %arg1, %c0_i32 : i32
    %1 = arith.extui %0 : i1 to i32
    %c0_i32_0 = arith.constant 0 : i32
    %2 = arith.cmpi ne, %1, %c0_i32_0 : i32
    scf.if %2 {
      %cst = arith.constant 0.000000e+00 : f32
      %11 = vector.broadcast %cst : f32 to vector<128x128xf32>
      %c0 = arith.constant 0 : index
      %c0_3 = arith.constant 0 : index
      %12 = vector.load %arg10[%c0, %c0_3] : memref<128x128xf32, #tpu.memory_space<vmem>>, vector<128x128xf32>
      tpu.vector_store %arg10[%c0, %c0_3], %11 {strides = array<i32>} : memref<128x128xf32, #tpu.memory_space<vmem>>, vector<128x128xf32>,
    } else {
    }
    %3 = arith.index_cast %arg0 : i32 to index
    %4 = memref.load %arg3[%3] : memref<2xi32, #tpu.memory_space<smem>>
    %5 = arith.cmpi slt, %arg1, %4 : i32
    %6 = arith.extui %5 : i1 to i32
    %c0_i32_1 = arith.constant 0 : i32
    %7 = arith.cmpi ne, %6, %c0_i32_1 : i32
    scf.if %7 {
      %c2_i32 = arith.constant 2 : i32
      %11 = arith.muli %arg0, %c2_i32 : i32
      %12 = arith.addi %11, %arg1 : i32
      %13 = arith.index_cast %12 : i32 to index
      %14 = memref.load %arg2[%13] : memref<4xi32, #tpu.memory_space<smem>>
      %c128_i32 = arith.constant 128 : i32
      %15 = arith.muli %14, %c128_i32 : i32
      %16 = tpu.assume_multiple %15, 128 : i32
      %17 = arith.index_cast %16 : i32 to index
      %c0 = arith.constant 0 : index
      %18 = vector.load %arg5[%17, %c0] : memref<256x128xbf16, #tpu.memory_space<vmem>>, vector<128x128xbf16>
      %c0_3 = arith.constant 0 : index
      %c0_4 = arith.constant 0 : index
      %19 = vector.load %arg10[%c0_3, %c0_4] : memref<128x128xf32, #tpu.memory_space<vmem>>, vector<128x128xf32>
      %c0_5 = arith.constant 0 : index
      %c0_6 = arith.constant 0 : index
      %20 = vector.load %arg4[%c0_5, %c0_6] : memref<128x128xbf16, #tpu.memory_space<vmem>>, vector<128x128xbf16>
      %cst = arith.constant dense<0.000000e+00> : vector<128x128xf32>
      %21 = tpu.matmul %20, %18, %cst {dimension_numbers = #tpu.dot_dimension_numbers<[1], [0], [0], [1], [0, 0, 1, 1], [], []>} : vector<128x128xbf16>, vector<128x128xbf16>, vector<128x128xf32> -> vector<128x128xf32>
      %22 = arith.addf %19, %21 : vector<128x128xf32>
      %c0_7 = arith.constant 0 : index
      %c0_8 = arith.constant 0 : index
      %23 = vector.load %arg10[%c0_7, %c0_8] : memref<128x128xf32, #tpu.memory_space<vmem>>, vector<128x128xf32>
      tpu.vector_store %arg10[%c0_7, %c0_8], %22 {strides = array<i32>} : memref<128x128xf32, #tpu.memory_space<vmem>>, vector<128x128xf32>,
    } else {
    }
    %c1_i32 = arith.constant 1 : i32
    %8 = arith.cmpi eq, %arg1, %c1_i32 : i32
    %9 = arith.extui %8 : i1 to i32
    %c0_i32_2 = arith.constant 0 : i32
    %10 = arith.cmpi ne, %9, %c0_i32_2 : i32
    scf.if %10 {
      %c0 = arith.constant 0 : index
      %c0_3 = arith.constant 0 : index
      %11 = vector.load %arg10[%c0, %c0_3] : memref<128x128xf32, #tpu.memory_space<vmem>>, vector<128x128xf32>
      %12 = arith.truncf %11 : vector<128x128xf32> to vector<128x128xbf16>
      %c0_4 = arith.constant 0 : index
      %c0_5 = arith.constant 0 : index
      %13 = vector.load %arg6[%c0_4, %c0_5] : memref<128x128xbf16, #tpu.memory_space<vmem>>, vector<128x128xbf16>
      %cst = arith.constant dense<0.000000e+00> : vector<128x128xf32>
      %14 = tpu.matmul %12, %13, %cst {dimension_numbers = #tpu.dot_dimension_numbers<[1], [0], [0], [1], [0, 0, 1, 1], [], []>} : vector<128x128xbf16>, vector<128x128xbf16>, vector<128x128xf32> -> vector<128x128xf32>
      %c0_6 = arith.constant 0 : index
      %c0_7 = arith.constant 0 : index
      %15 = vector.load %arg7[%c0_6, %c0_7] : memref<1x128xf32, #tpu.memory_space<vmem>>, vector<1x128xf32>
      %16 = vector.broadcast %15 : vector<1x128xf32> to vector<128x128xf32>
      %17 = arith.addf %14, %16 : vector<128x128xf32>
      %cst_8 = arith.constant 0.000000e+00 : f32
      %18 = vector.broadcast %cst_8 : f32 to vector<128x128xf32>
      %19 = arith.maximumf %17, %18 : vector<128x128xf32>
      %20 = arith.truncf %19 : vector<128x128xf32> to vector<128x128xbf16>
      %c0_9 = arith.constant 0 : index
      %c0_10 = arith.constant 0 : index
      %21 = vector.load %arg8[%c0_9, %c0_10] : memref<128x128xbf16, #tpu.memory_space<vmem>>, vector<128x128xbf16>
      %cst_11 = arith.constant dense<0.000000e+00> : vector<128x128xf32>
      %22 = tpu.matmul %20, %21, %cst_11 {dimension_numbers = #tpu.dot_dimension_numbers<[1], [0], [0], [1], [0, 0, 1, 1], [], []>} : vector<128x128xbf16>, vector<128x128xbf16>, vector<128x128xf32> -> vector<128x128xf32>
      %23 = arith.truncf %22 : vector<128x128xf32> to vector<128x128xbf16>
      %c0_12 = arith.constant 0 : index
      %c0_13 = arith.constant 0 : index
      %24 = vector.load %arg9[%c0_12, %c0_13] : memref<128x128xbf16, #tpu.memory_space<vmem>>, vector<128x128xbf16>
      tpu.vector_store %arg9[%c0_12, %c0_13], %23 {strides = array<i32>} : memref<128x128xbf16, #tpu.memory_space<vmem>>, vector<128x128xbf16>,
    } else {
    }
    return
  }
  func.func @transform_0(%arg0: i32, %arg1: i32, %arg2: memref<4xi32, #tpu.memory_space<smem>>, %arg3: memref<2xi32, #tpu.memory_space<smem>>) -> (i32, i32) {
    %c2_i32 = arith.constant 2 : i32
    %0 = arith.muli %arg0, %c2_i32 : i32
    %1 = arith.addi %0, %arg1 : i32
    %2 = arith.index_cast %1 : i32 to index
    %3 = memref.load %arg2[%2] : memref<4xi32, #tpu.memory_space<smem>>
    %c0_i32 = arith.constant 0 : i32
    return %arg0, %3 : i32, i32
  }
  func.func @transform_1(%arg0: i32, %arg1: i32, %arg2: memref<4xi32, #tpu.memory_space<smem>>, %arg3: memref<2xi32, #tpu.memory_space<smem>>) -> (i32, i32) {
    %c0_i32 = arith.constant 0 : i32
    %c0_i32_0 = arith.constant 0 : i32
    %c0_i32_1 = arith.constant 0 : i32
    return %c0_i32, %c0_i32_0 : i32, i32
  }
  func.func @transform_2(%arg0: i32, %arg1: i32, %arg2: memref<4xi32, #tpu.memory_space<smem>>, %arg3: memref<2xi32, #tpu.memory_space<smem>>) -> (i32, i32) {
    %c0_i32 = arith.constant 0 : i32
    %c0_i32_0 = arith.constant 0 : i32
    %c0_i32_1 = arith.constant 0 : i32
    return %c0_i32, %c0_i32_0 : i32, i32
  }
  func.func @transform_3(%arg0: i32, %arg1: i32, %arg2: memref<4xi32, #tpu.memory_space<smem>>, %arg3: memref<2xi32, #tpu.memory_space<smem>>) -> (i32, i32) {
    %c0_i32 = arith.constant 0 : i32
    %c0_i32_0 = arith.constant 0 : i32
    %c0_i32_1 = arith.constant 0 : i32
    return %c0_i32, %c0_i32_0 : i32, i32
  }
  func.func @transform_4(%arg0: i32, %arg1: i32, %arg2: memref<4xi32, #tpu.memory_space<smem>>, %arg3: memref<2xi32, #tpu.memory_space<smem>>) -> (i32, i32) {
    %c0_i32 = arith.constant 0 : i32
    %c0_i32_0 = arith.constant 0 : i32
    %c0_i32_1 = arith.constant 0 : i32
    return %c0_i32, %c0_i32_0 : i32, i32
  }
  func.func @transform_5(%arg0: i32, %arg1: i32, %arg2: memref<4xi32, #tpu.memory_space<smem>>, %arg3: memref<2xi32, #tpu.memory_space<smem>>) -> (i32, i32) {
    %c0_i32 = arith.constant 0 : i32
    %c0_i32_0 = arith.constant 0 : i32
    return %arg0, %c0_i32 : i32, i32
  }
}

</mosaic_0001>

<llo_original>
// kernel: tpu_custom_call.1
$region0: #{tpu_custom_call.1}
  #allocation0 [shape = 'u32[]', space=smem, size = 0x4, offset = 0x4, fixed_abs, tag = 'smem constant byte address 0x4 - core index']
  #allocation1 [shape = 'u32[144,128]{1,0:T(1,128)}', space=vmem, size = 0x12000, scoped, tag = 'internal scratch']
  #allocation2 [shape = 'f32[128,128]{1,0:T(8,128)}', space=vmem, size = 0x10000, scoped, tag = 'scratch operand']
  #allocation3 [shape = 's32[1]{0}', space=sflag, size = 0x4, scoped, tag = 'scoped memory for tpu_custom_call.1']
  #allocation4 [shape = 'u8[512]{0}', space=smem, size = 0x200, scoped, tag = 'prefetched SMEM operand 0']
  #allocation5 [shape = 'u8[512]{0}', space=smem, size = 0x200, scoped, tag = 'prefetched SMEM operand 1']
  %s0 = inlined_call_operand.hbm [shape: s32[4], index: 0, kind: input, shape index: {}]
  %s1 = inlined_call_operand.vmem [shape: s32[2], index: 1, kind: input, shape index: {}]
  %s2 = inlined_call_operand.hbm [shape: bf16[256,256], index: 2, kind: input, shape index: {}]
  %s3 = inlined_call_operand.hbm [shape: bf16[256,128], index: 3, kind: input, shape index: {}]
  %s4 = inlined_call_operand.hbm [shape: bf16[128,128], index: 4, kind: input, shape index: {}]
  %s5 = inlined_call_operand.vmem [shape: f32[1,128], index: 5, kind: input, shape index: {}]
  %s6 = inlined_call_operand.hbm [shape: bf16[128,128], index: 6, kind: input, shape index: {}]
  %s7 = inlined_call_operand.hbm [shape: bf16[256,128], index: 7, kind: output, shape index: {}]
  %s8 = sld [smem:[#allocation0]]
  $region81: #{tpu_custom_call.1} parent=0
    _
  %s10 = ssub.s32 1, %s8
  %s11 = scalar_select 0, %s10, %s8
  %13 = dma.hbm_to_smem %s0, 16, [#allocation4], [#allocation3]
  %s14 = sshll.u32 %s1, 4
  %s15 = int_to_ptr.vmem [resolvable:$true] %s14
  %17 = dma.vmem_to_smem %s15, 16, [#allocation5], [#allocation3]
  %18 = dma.done [#allocation3], 32
  %19 = sfence
  $region1: #{tpu_custom_call.1} parent=0
    #allocation6 [shape = 'u8[65536]{0}', space=vmem, size = 0x10000, scoped, tag = 'input window, operand 2']
    #allocation7 [shape = 's32[2]{0}', space=sflag, size = 0x8, scoped, tag = 'scoped memory for tpu_custom_call.1']
    #allocation8 [shape = 's32[2]{0}', space=sflag, size = 0x8, scoped, tag = 'scoped memory for tpu_custom_call.1']
    #allocation9 [shape = 'u8[65536]{0}', space=vmem, size = 0x10000, scoped, tag = 'input window, operand 3, single buffered']
    #allocation10 [shape = 's32[1]{0}', space=sflag, size = 0x4, scoped, tag = 'scoped memory for tpu_custom_call.1']
    #allocation11 [shape = 'u8[32768]{0}', space=vmem, size = 0x8000, scoped, tag = 'input window, operand 4, single buffered']
    #allocation12 [shape = 'u8[32768]{0}', space=vmem, size = 0x8000, scoped, tag = 'input window, operand 6, single buffered']
    #allocation13 [shape = 's32[1]{0}', space=sflag, size = 0x4, scoped, tag = 'scoped memory for tpu_custom_call.1']
    #allocation14 [shape = 'u8[65536]{0}', space=vmem, size = 0x10000, scoped, tag = 'output window, operand 0']
    %20 = vsyncpa [#allocation7], 0
    %s21 = scalar_lea.sflag [#allocation7], 1
    %22 = vsyncpa %s21, 0
    %23 = vsyncpa [#allocation10], 0
    %24 = vsyncpa [#allocation13], 0
    %25 = vsyncpa [#allocation8], 0
    %s26 = scalar_lea.sflag [#allocation8], 1
    %27 = vsyncpa %s26, 0
    loop: start=0, step=1, limit=6
    $region2: #{tpu_custom_call.1} parent=1 // loop_pre_header
      _
    $region3: #{tpu_custom_call.1} parent=1 // loop_header
      %s29 = sphi 0, %s33
      %p30 = scmp.ge.s32.totalorder %s29, 6
      %s36 = sphi 0, %s48
      %s37 = sphi 0, %s44
      %s38 = sphi 0, %s36
      %s39 = sphi 0, %s37
      %s40 = sphi 0, %s38
      %s41 = sphi 0, %s39
      %s59 = sphi 0, %s61
      %s62 = sphi 0, %s59
      %s63 = sphi 0, %s62
      %s79 = sphi 0, %s63
      %s83 = sphi 0, %s83
      %s85 = sphi 0, %s83
      %s86 = sphi 0, %s85
      %s100 = sphi 0, %s86
      %s104 = sphi 0, %s104
      %s106 = sphi 0, %s104
      %s107 = sphi 0, %s106
      %s121 = sphi 0, %s107
      %s125 = sphi 0, %s125
      %s127 = sphi 0, %s125
      %s128 = sphi 0, %s127
      %s142 = sphi 0, %s128
      %s146 = sphi 0, %s146
      %s148 = sphi 0, %s146
      %s149 = sphi 0, %s148
      %s163 = sphi 0, %s149
      %s169 = sphi 0, %s171
      %s172 = sphi 0, %s169
      %s173 = sphi 0, %s172
      %s189 = sphi 0, %s173
    $region4: #{tpu_custom_call.1} parent=1 // loop_header_branch
      %32 = sbr.rel (%p30) target = $region8
    $region5: #{tpu_custom_call.1} parent=1 // loop_body
      %s34 = ssub.s32 %s29, 1
      %s35 = ssub.s32 %s29, 2
      %s42 = sadd.s32 1, %s37
      %p43 = scmp.ge.s32.totalorder %s42, 2
      %s44 = scalar_select %p43, 0, %s42
      %s45 = sadd.s32 1, %s36
      %s46 = scalar_select %p43, %s45, %s36
      %p47 = scmp.ge.s32.totalorder %s46, 2
      %s48 = scalar_select %p47, 0, %s46
      %s49 = smul.u32 %s36, 2
      %s50 = sadd.s32 %s49, %s37
      %s51 = sld [smem:[#allocation4 + %s50]]
      %s52 = smul.u32 %s48, 2
      %s53 = sadd.s32 %s52, %s44
      %s54 = sld [smem:[#allocation4 + %s53]]
      %s55 = ssub.s32 %s36, %s48
      %s56 = ssub.s32 %s51, %s54
      %s57 = sor.u32 %s55, %s56
      %p58 = scmp.eq.s32.totalorder %s57, 0
      %s60 = sadd.s32 %s59, 1
      %s61 = scalar_select %p58, %s59, %s60
      %p64 = pneg %p58
      %p65 = scmp.eq.s32.totalorder %s29, 3
      %p66 = por %p64, %p65
      %p67 = scmp.ne.s32.totalorder %s59, %s62
      %p68 = scmp.eq.s32.totalorder %s29, 0
      %p69 = por %p67, %p68
      %p70 = scmp.ne.s32.totalorder %s59, %s62
      %p71 = scmp.eq.s32.totalorder %s34, 3
      %p72 = por %p70, %p71
      %p73 = scmp.ne.s32.totalorder %s62, %s63
      %p74 = scmp.eq.s32.totalorder %s34, 0
      %p75 = por %p73, %p74
      %p76 = scmp.ne.s32.totalorder %s62, %s63
      %p77 = scmp.eq.s32.totalorder %s35, 3
      %p78 = por %p76, %p77
      %p80 = scmp.ne.s32.totalorder %s63, %s79
      %p81 = scmp.eq.s32.totalorder %s35, 0
      %p82 = por %p80, %p81
      %s84 = sadd.s32 %s83, 1
      %p87 = scmp.eq.s32.totalorder %s29, 3
      %p88 = scmp.ne.s32.totalorder %s83, %s85
      %p89 = scmp.eq.s32.totalorder %s29, 0
      %p90 = por %p88, %p89
      %p91 = scmp.ne.s32.totalorder %s83, %s85
      %p92 = scmp.eq.s32.totalorder %s34, 3
      %p93 = por %p91, %p92
      %p94 = scmp.ne.s32.totalorder %s85, %s86
      %p95 = scmp.eq.s32.totalorder %s34, 0
      %p96 = por %p94, %p95
      %p97 = scmp.ne.s32.totalorder %s85, %s86
      %p98 = scmp.eq.s32.totalorder %s35, 3
      %p99 = por %p97, %p98
      %p101 = scmp.ne.s32.totalorder %s86, %s100
      %p102 = scmp.eq.s32.totalorder %s35, 0
      %p103 = por %p101, %p102
      %s105 = sadd.s32 %s104, 1
      %p108 = scmp.eq.s32.totalorder %s29, 3
      %p109 = scmp.ne.s32.totalorder %s104, %s106
      %p110 = scmp.eq.s32.totalorder %s29, 0
      %p111 = por %p109, %p110
      %p112 = scmp.ne.s32.totalorder %s104, %s106
      %p113 = scmp.eq.s32.totalorder %s34, 3
      %p114 = por %p112, %p113
      %p115 = scmp.ne.s32.totalorder %s106, %s107
      %p116 = scmp.eq.s32.totalorder %s34, 0
      %p117 = por %p115, %p116
      %p118 = scmp.ne.s32.totalorder %s106, %s107
      %p119 = scmp.eq.s32.totalorder %s35, 3
      %p120 = por %p118, %p119
      %p122 = scmp.ne.s32.totalorder %s107, %s121
      %p123 = scmp.eq.s32.totalorder %s35, 0
      %p124 = por %p122, %p123
      %s126 = sadd.s32 %s125, 1
      %p129 = scmp.eq.s32.totalorder %s29, 3
      %p130 = scmp.ne.s32.totalorder %s125, %s127
      %p131 = scmp.eq.s32.totalorder %s29, 0
      %p132 = por %p130, %p131
      %p133 = scmp.ne.s32.totalorder %s125, %s127
      %p134 = scmp.eq.s32.totalorder %s34, 3
      %p135 = por %p133, %p134
      %p136 = scmp.ne.s32.totalorder %s127, %s128
      %p137 = scmp.eq.s32.totalorder %s34, 0
      %p138 = por %p136, %p137
      %p139 = scmp.ne.s32.totalorder %s127, %s128
      %p140 = scmp.eq.s32.totalorder %s35, 3
      %p141 = por %p139, %p140
      %p143 = scmp.ne.s32.totalorder %s128, %s142
      %p144 = scmp.eq.s32.totalorder %s35, 0
      %p145 = por %p143, %p144
      %s147 = sadd.s32 %s146, 1
      %p150 = scmp.eq.s32.totalorder %s29, 3
      %p151 = scmp.ne.s32.totalorder %s146, %s148
      %p152 = scmp.eq.s32.totalorder %s29, 0
      %p153 = por %p151, %p152
      %p154 = scmp.ne.s32.totalorder %s146, %s148
      %p155 = scmp.eq.s32.totalorder %s34, 3
      %p156 = por %p154, %p155
      %p157 = scmp.ne.s32.totalorder %s148, %s149
      %p158 = scmp.eq.s32.totalorder %s34, 0
      %p159 = por %p157, %p158
      %p160 = scmp.ne.s32.totalorder %s148, %s149
      %p161 = scmp.eq.s32.totalorder %s35, 3
      %p162 = por %p160, %p161
      %p164 = scmp.ne.s32.totalorder %s149, %s163
      %p165 = scmp.eq.s32.totalorder %s35, 0
      %p166 = por %p164, %p165
      %s167 = ssub.s32 %s36, %s48
      %p168 = scmp.eq.s32.totalorder %s167, 0
      %s170 = sadd.s32 %s169, 1
      %s171 = scalar_select %p168, %s169, %s170
      %p174 = pneg %p168
      %p175 = scmp.eq.s32.totalorder %s29, 3
      %p176 = por %p174, %p175
      %p177 = scmp.ne.s32.totalorder %s169, %s172
      %p178 = scmp.eq.s32.totalorder %s29, 0
      %p179 = por %p177, %p178
      %p180 = scmp.ne.s32.totalorder %s169, %s172
      %p181 = scmp.eq.s32.totalorder %s34, 3
      %p182 = por %p180, %p181
      %p183 = scmp.ne.s32.totalorder %s172, %s173
      %p184 = scmp.eq.s32.totalorder %s34, 0
      %p185 = por %p183, %p184
      %p186 = scmp.ne.s32.totalorder %s172, %s173
      %p187 = scmp.eq.s32.totalorder %s35, 3
      %p188 = por %p186, %p187
      %p190 = scmp.ne.s32.totalorder %s173, %s189
      %p191 = scmp.eq.s32.totalorder %s35, 0
      %p192 = por %p190, %p191
      %p193 = scmp.le.s32.totalorder 1, %s29
      %p194 = scmp.lt.s32.totalorder %s29, 5
      %p195 = pnand %p193, %p194
      %p196 = pneg %p195
      // Predicated region
      $region9: #{tpu_custom_call.1} parent=5 // pred_check
        _
      $region10: #{tpu_custom_call.1} parent=5 // pred_check_branch
        %198 = sbr.rel (%p195) target = $region12
      $region11: #{tpu_custom_call.1} parent=5 // pred_region
        %s199 = ssub.s32 %s29, 1
        // Predicated region
        $region13: #{tpu_custom_call.1} parent=11 // pred_check
          %p200 = pneg %p96
        $region14: #{tpu_custom_call.1} parent=11 // pred_check_branch
          %202 = sbr.rel (%p200) target = $region16
        $region15: #{tpu_custom_call.1} parent=11 // pred_region
          %s204 = ssub.s32 2048, 2048
          %205 = vsyncadd [#allocation10], %s204
          %s206 = sshll.u32 [#allocation9], 4
          %s207 = int_to_ptr.vmem [resolvable:$true] %s206
          %212 = dma.hbm_to_vmem [thread:$0]  %s3, 2048, %s207, [#allocation10], 64, 64, 4
        $region16: #{tpu_custom_call.1} parent=11 // pred_fallthru
          _
        // Predicated region
        $region17: #{tpu_custom_call.1} parent=11 // pred_check
          %p213 = pneg %p117
        $region18: #{tpu_custom_call.1} parent=11 // pred_check_branch
          %215 = sbr.rel (%p213) target = $region20
        $region19: #{tpu_custom_call.1} parent=11 // pred_region
          %s217 = ssub.s32 1024, 1024
          %218 = vsyncadd [#allocation10], %s217
          %s219 = sshll.u32 [#allocation11], 4
          %s220 = int_to_ptr.vmem [resolvable:$true] %s219
          %225 = dma.hbm_to_vmem [thread:$0]  %s4, 1024, %s220, [#allocation10], 64, 64, 4
        $region20: #{tpu_custom_call.1} parent=11 // pred_fallthru
          _
        // Predicated region
        $region21: #{tpu_custom_call.1} parent=11 // pred_check
          %p226 = pneg %p138
        $region22: #{tpu_custom_call.1} parent=11 // pred_check_branch
          %228 = sbr.rel (%p226) target = $region24
        $region23: #{tpu_custom_call.1} parent=11 // pred_region
          _
        $region24: #{tpu_custom_call.1} parent=11 // pred_fallthru
          _
        // Predicated region
        $region25: #{tpu_custom_call.1} parent=11 // pred_check
          %p229 = pneg %p159
        $region26: #{tpu_custom_call.1} parent=11 // pred_check_branch
          %231 = sbr.rel (%p229) target = $region28
        $region27: #{tpu_custom_call.1} parent=11 // pred_region
          %s233 = ssub.s32 1024, 1024
          %234 = vsyncadd [#allocation13], %s233
          %s235 = sshll.u32 [#allocation12], 4
          %s236 = int_to_ptr.vmem [resolvable:$true] %s235
          %241 = dma.hbm_to_vmem [thread:$0]  %s6, 1024, %s236, [#allocation13], 64, 64, 4
        $region28: #{tpu_custom_call.1} parent=11 // pred_fallthru
          _
      $region12: #{tpu_custom_call.1} parent=5 // pred_fallthru
        _
      %p242 = scmp.lt.s32.totalorder %s29, 4
      // Predicated region
      $region29: #{tpu_custom_call.1} parent=5 // pred_check
        %p243 = pneg %p242
      $region30: #{tpu_custom_call.1} parent=5 // pred_check_branch
        %245 = sbr.rel (%p243) target = $region32
      $region31: #{tpu_custom_call.1} parent=5 // pred_region
        // Predicated region
        $region33: #{tpu_custom_call.1} parent=31 // pred_check
          %p246 = pneg %p69
        $region34: #{tpu_custom_call.1} parent=31 // pred_check_branch
          %248 = sbr.rel (%p246) target = $region36
        $region35: #{tpu_custom_call.1} parent=31 // pred_region
          %s249 = sand.u32 %s59, 1
          %s250 = scalar_lea.sflag [#allocation7], %s249
          %s251 = sand.u32 %s59, 1
          %s252 = smul.addr %s251, 64
          %s253 = scalar_lea.vmem [#allocation6], %s252
          %s254 = smul.u32 %s36, 2
          %s255 = sadd.s32 %s254, %s37
          %s256 = sld [smem:[#allocation4 + %s255]]
          %s257 = smul.u32 16, %s36
          %s259 = ssub.s32 1024, 1024
          %260 = vsyncadd %s250, %s259
          %s261 = smul.addr %s257, 2
          %s262 = sadd.s32 %s256, %s261
          %s263 = smul.addr %s262, 64
          %s264 = scalar_lea.hbm %s2, %s263
          %s265 = sshll.u32 %s253, 4
          %s266 = int_to_ptr.vmem [resolvable:$true] %s265
          %271 = dma.hbm_to_vmem [thread:$0]  %s264, 1024, %s266, %s250, 128, 64, 4
        $region36: #{tpu_custom_call.1} parent=31 // pred_fallthru
          _
      $region32: #{tpu_custom_call.1} parent=5 // pred_fallthru
        _
      %p272 = scmp.le.s32.totalorder 1, %s29
      %p273 = scmp.lt.s32.totalorder %s29, 5
      %p274 = pnand %p272, %p273
      %p275 = pneg %p274
      // Predicated region
      $region37: #{tpu_custom_call.1} parent=5 // pred_check
        _
      $region38: #{tpu_custom_call.1} parent=5 // pred_check_branch
        %277 = sbr.rel (%p274) target = $region40
      $region39: #{tpu_custom_call.1} parent=5 // pred_region
        %s278 = ssub.s32 %s29, 1
        %s279 = sand.u32 %s62, 1
        %s280 = scalar_lea.sflag [#allocation7], %s279
        %s281 = sand.u32 %s62, 1
        %s282 = smul.addr %s281, 64
        %s283 = scalar_lea.vmem [#allocation6], %s282
        // Predicated region
        $region41: #{tpu_custom_call.1} parent=39 // pred_check
          %p284 = pneg %p75
        $region42: #{tpu_custom_call.1} parent=39 // pred_check_branch
          %286 = sbr.rel (%p284) target = $region44
        $region43: #{tpu_custom_call.1} parent=39 // pred_region
          %287 = dma.done %s280, 1024
        $region44: #{tpu_custom_call.1} parent=39 // pred_fallthru
          _
        // Predicated region
        $region45: #{tpu_custom_call.1} parent=39 // pred_check
          %p288 = pneg %p96
        $region46: #{tpu_custom_call.1} parent=39 // pred_check_branch
          %290 = sbr.rel (%p288) target = $region48
        $region47: #{tpu_custom_call.1} parent=39 // pred_region
          %291 = dma.done [#allocation10], 2048
        $region48: #{tpu_custom_call.1} parent=39 // pred_fallthru
          _
        // Predicated region
        $region49: #{tpu_custom_call.1} parent=39 // pred_check
          %p292 = pneg %p117
        $region50: #{tpu_custom_call.1} parent=39 // pred_check_branch
          %294 = sbr.rel (%p292) target = $region52
        $region51: #{tpu_custom_call.1} parent=39 // pred_region
          %295 = dma.done [#allocation10], 1024
        $region52: #{tpu_custom_call.1} parent=39 // pred_fallthru
          _
        // Predicated region
        $region53: #{tpu_custom_call.1} parent=39 // pred_check
          %p296 = pneg %p159
        $region54: #{tpu_custom_call.1} parent=39 // pred_check_branch
          %298 = sbr.rel (%p296) target = $region56
        $region55: #{tpu_custom_call.1} parent=39 // pred_region
          %299 = dma.done [#allocation13], 1024
        $region56: #{tpu_custom_call.1} parent=39 // pred_fallthru
          _
        %s300 = sand.u32 %s62, 1
        %s301 = scalar_lea.sflag [#allocation7], %s300
        %s302 = sand.u32 %s62, 1
        %s303 = smul.addr %s302, 64
        %s304 = scalar_lea.vmem [#allocation6], %s303
        %p305 = pneg %p75
        %p306 = pneg %p72
        %p307 = pneg %p96
        %p308 = pneg %p93
        %p309 = pneg %p117
        %p310 = pneg %p114
        %p311 = pneg %p138
        %p312 = pneg %p135
        %p313 = pneg %p159
        %p314 = pneg %p156
        %p315 = pneg %p185
        %p316 = pneg %p182
        %s317 = sand.u32 %s172, 1
        %s318 = scalar_lea.sflag [#allocation8], %s317
        %s319 = sand.u32 %s172, 1
        %s320 = smul.addr %s319, 64
        %s321 = scalar_lea.vmem [#allocation14], %s320
        %s322 = smul.u32 %s38, 2
        %s323 = sadd.s32 %s322, %s39
        %s324 = sld [smem:[#allocation4 + %s323]]
        %s325 = smul.u32 16, %s38
        %s326 = smul.u32 16, %s38
        %p328 = scmp.eq.s32.totalorder %s39, 0
        // Predicated region
        $region57: #{tpu_custom_call.1} parent=39 // pred_check
          %p329 = pneg %p328
        $region58: #{tpu_custom_call.1} parent=39 // pred_check_branch
          %331 = sbr.rel (%p329) target = $region60
        $region59: #{tpu_custom_call.1} parent=39 // pred_region
          %332 = vst [vmem:[#allocation2] sm:$0xff] 0.0
          %333 = vst [vmem:[#allocation2 + $0x8] sm:$0xff] 0.0
          %334 = vst [vmem:[#allocation2 + $0x10] sm:$0xff] 0.0
          %335 = vst [vmem:[#allocation2 + $0x18] sm:$0xff] 0.0
          %336 = vst [vmem:[#allocation2 + $0x20] sm:$0xff] 0.0
          %337 = vst [vmem:[#allocation2 + $0x28] sm:$0xff] 0.0
          %338 = vst [vmem:[#allocation2 + $0x30] sm:$0xff] 0.0
          %339 = vst [vmem:[#allocation2 + $0x38] sm:$0xff] 0.0
          %340 = vst [vmem:[#allocation2 + $0x40] sm:$0xff] 0.0
          %341 = vst [vmem:[#allocation2 + $0x48] sm:$0xff] 0.0
          %342 = vst [vmem:[#allocation2 + $0x50] sm:$0xff] 0.0
          %343 = vst [vmem:[#allocation2 + $0x58] sm:$0xff] 0.0
          %344 = vst [vmem:[#allocation2 + $0x60] sm:$0xff] 0.0
          %345 = vst [vmem:[#allocation2 + $0x68] sm:$0xff] 0.0
          %346 = vst [vmem:[#allocation2 + $0x70] sm:$0xff] 0.0
          %347 = vst [vmem:[#allocation2 + $0x78] sm:$0xff] 0.0
        $region60: #{tpu_custom_call.1} parent=39 // pred_fallthru
          _
        %s348 = sld [smem:[#allocation5 + %s38]]
        %p349 = scmp.lt.s32.totalorder %s39, %s348
        // Predicated region
        $region61: #{tpu_custom_call.1} parent=39 // pred_check
          %p350 = pneg %p349
        $region62: #{tpu_custom_call.1} parent=39 // pred_check_branch
          %352 = sbr.rel (%p350) target = $region64
        $region63: #{tpu_custom_call.1} parent=39 // pred_region
          %s353 = smul.u32 %s38, 2
          %s354 = sadd.s32 %s353, %s39
          %s355 = sld [smem:[#allocation4 + %s354]]
          %s356 = smul.u32 %s355, 128
          %s357 = sshra.s32 %s356, 3
          %s358 = sand.u32 %s356, 7
          %s359 = smul.addr %s357, 4
          %s360 = scalar_lea.vmem [#allocation9], %s359
          %v361 = vld [vmem:[%s360] sm:$0xf]
          %v362 = vld [vmem:[%s360 + $0x4] sm:$0xf]
          %v363 = vld [vmem:[%s360 + $0x8] sm:$0xf]
          %v364 = vld [vmem:[%s360 + $0xc] sm:$0xf]
          %v365 = vld [vmem:[%s360 + $0x10] sm:$0xf]
          %v366 = vld [vmem:[%s360 + $0x14] sm:$0xf]
          %v367 = vld [vmem:[%s360 + $0x18] sm:$0xf]
          %v368 = vld [vmem:[%s360 + $0x1c] sm:$0xf]
          %v369 = vld [vmem:[%s360 + $0x20] sm:$0xf]
          %v370 = vld [vmem:[%s360 + $0x24] sm:$0xf]
          %v371 = vld [vmem:[%s360 + $0x28] sm:$0xf]
          %v372 = vld [vmem:[%s360 + $0x2c] sm:$0xf]
          %v373 = vld [vmem:[%s360 + $0x30] sm:$0xf]
          %v374 = vld [vmem:[%s360 + $0x34] sm:$0xf]
          %v375 = vld [vmem:[%s360 + $0x38] sm:$0xf]
          %v376 = vld [vmem:[%s360 + $0x3c] sm:$0xf]
          %v377 = vld [vmem:[#allocation2] sm:$0xff]
          %v378 = vld [vmem:[#allocation2 + $0x8] sm:$0xff]
          %v379 = vld [vmem:[#allocation2 + $0x10] sm:$0xff]
          %v380 = vld [vmem:[#allocation2 + $0x18] sm:$0xff]
          %v381 = vld [vmem:[#allocation2 + $0x20] sm:$0xff]
          %v382 = vld [vmem:[#allocation2 + $0x28] sm:$0xff]
          %v383 = vld [vmem:[#allocation2 + $0x30] sm:$0xff]
          %v384 = vld [vmem:[#allocation2 + $0x38] sm:$0xff]
          %v385 = vld [vmem:[#allocation2 + $0x40] sm:$0xff]
          %v386 = vld [vmem:[#allocation2 + $0x48] sm:$0xff]
          %v387 = vld [vmem:[#allocation2 + $0x50] sm:$0xff]
          %v388 = vld [vmem:[#allocation2 + $0x58] sm:$0xff]
          %v389 = vld [vmem:[#allocation2 + $0x60] sm:$0xff]
          %v390 = vld [vmem:[#allocation2 + $0x68] sm:$0xff]
          %v391 = vld [vmem:[#allocation2 + $0x70] sm:$0xff]
          %v392 = vld [vmem:[#allocation2 + $0x78] sm:$0xff]
          %v393 = vld [vmem:[%s283] sm:$0xf]
          %v394 = vld [vmem:[%s283 + $0x4] sm:$0xf]
          %v395 = vld [vmem:[%s283 + $0x8] sm:$0xf]
          %v396 = vld [vmem:[%s283 + $0xc] sm:$0xf]
          %v397 = vld [vmem:[%s283 + $0x10] sm:$0xf]
          %v398 = vld [vmem:[%s283 + $0x14] sm:$0xf]
          %v399 = vld [vmem:[%s283 + $0x18] sm:$0xf]
          %v400 = vld [vmem:[%s283 + $0x1c] sm:$0xf]
          %v401 = vld [vmem:[%s283 + $0x20] sm:$0xf]
          %v402 = vld [vmem:[%s283 + $0x24] sm:$0xf]
          %v403 = vld [vmem:[%s283 + $0x28] sm:$0xf]
          %v404 = vld [vmem:[%s283 + $0x2c] sm:$0xf]
          %v405 = vld [vmem:[%s283 + $0x30] sm:$0xf]
          %v406 = vld [vmem:[%s283 + $0x34] sm:$0xf]
          %v407 = vld [vmem:[%s283 + $0x38] sm:$0xf]
          %v408 = vld [vmem:[%s283 + $0x3c] sm:$0xf]
          %v425 = vunpack.c.l.b16 %v393
          %v426 = vunpack.c.l.b16 %v394
          %v427 = vunpack.c.l.b16 %v395
          %v428 = vunpack.c.l.b16 %v396
          %v429 = vunpack.c.l.b16 %v397
          %v430 = vunpack.c.l.b16 %v398
          %v431 = vunpack.c.l.b16 %v399
          %v432 = vunpack.c.l.b16 %v400
          %v433 = vunpack.c.l.b16 %v401
          %v434 = vunpack.c.l.b16 %v402
          %v435 = vunpack.c.l.b16 %v403
          %v436 = vunpack.c.l.b16 %v404
          %v437 = vunpack.c.l.b16 %v405
          %v438 = vunpack.c.l.b16 %v406
          %v439 = vunpack.c.l.b16 %v407
          %v440 = vunpack.c.l.b16 %v408
          %v441 = vpack.c.b16 %v426, %v425
          %v442 = vpack.c.b16 %v428, %v427
          %v443 = vpack.c.b16 %v430, %v429
          %v444 = vpack.c.b16 %v432, %v431
          %v445 = vpack.c.b16 %v434, %v433
          %v446 = vpack.c.b16 %v436, %v435
          %v447 = vpack.c.b16 %v438, %v437
          %v448 = vpack.c.b16 %v440, %v439
          %v473 = vunpack.c.l.b16 %v361
          %v474 = vunpack.c.l.b16 %v362
          %v475 = vunpack.c.l.b16 %v363
          %v476 = vunpack.c.l.b16 %v364
          %v477 = vunpack.c.l.b16 %v365
          %v478 = vunpack.c.l.b16 %v366
          %v479 = vunpack.c.l.b16 %v367
          %v480 = vunpack.c.l.b16 %v368
          %v481 = vunpack.c.l.b16 %v369
          %v482 = vunpack.c.l.b16 %v370
          %v483 = vunpack.c.l.b16 %v371
          %v484 = vunpack.c.l.b16 %v372
          %v485 = vunpack.c.l.b16 %v373
          %v486 = vunpack.c.l.b16 %v374
          %v487 = vunpack.c.l.b16 %v375
          %v488 = vunpack.c.l.b16 %v376
          %v489 = vpack.c.b16 %v474, %v473
          %v490 = vpack.c.b16 %v476, %v475
          %v491 = vpack.c.b16 %v478, %v477
          %v492 = vpack.c.b16 %v480, %v479
          %v493 = vpack.c.b16 %v482, %v481
          %v494 = vpack.c.b16 %v484, %v483
          %v495 = vpack.c.b16 %v486, %v485
          %v496 = vpack.c.b16 %v488, %v487
          %505 = vmatprep.subr.bf16.mxu0 0
          %506 = vmatpush1.bf16.msra.mxu0 %v489
          %507 = vmatprep.subr.bf16.mxu0 0
          %508 = vmatpush1.bf16.msra.mxu0 %v490
          %509 = vmatprep.subr.bf16.mxu0 0
          %510 = vmatpush1.bf16.msra.mxu0 %v491
          %511 = vmatprep.subr.bf16.mxu0 0
          %512 = vmatpush1.bf16.msra.mxu0 %v492
          %513 = vmatprep.subr.bf16.mxu0 0
          %514 = vmatpush1.bf16.msra.mxu0 %v493
          %515 = vmatprep.subr.bf16.mxu0 0
          %516 = vmatpush1.bf16.msra.mxu0 %v494
          %517 = vmatprep.subr.bf16.mxu0 0
          %518 = vmatpush1.bf16.msra.mxu0 %v495
          %519 = vmatprep.subr.bf16.mxu0 0
          %520 = vmatpush1.bf16.msra.mxu0 %v496
          %521 = vmatprep.subr.bf16.mxu0 0
          %522 = vmatpush1.bf16.msra.mxu0 0
          %523 = vmatprep.subr.bf16.mxu0 0
          %524 = vmatpush1.bf16.msra.mxu0 0
          %525 = vmatprep.subr.bf16.mxu0 0
          %526 = vmatpush1.bf16.msra.mxu0 0
          %527 = vmatprep.subr.bf16.mxu0 0
          %528 = vmatpush1.bf16.msra.mxu0 0
          %529 = vmatprep.subr.bf16.mxu0 0
          %530 = vmatpush1.bf16.msra.mxu0 0
          %531 = vmatprep.subr.bf16.mxu0 0
          %532 = vmatpush1.bf16.msra.mxu0 0
          %533 = vmatprep.subr.bf16.mxu0 0
          %534 = vmatpush1.bf16.msra.mxu0 0
          %535 = vmatprep.subr.bf16.mxu0 0
          %536 = vmatpush1.bf16.msra.mxu0 0
          %537 = vmatprep.mubr.bf16.mxu0 0
          %538 = vmatmul.mubr.bf16.gmra.mrb[0].mxu0 %v441
          %v539 = vpop.f32.mrb[0].mxu0
          %v540 = vadd.f32 0.0, %v539
          %v541 = vpop.f32.mrb[0].mxu0
          %v542 = vpop.f32.mrb[0].mxu0
          %v543 = vadd.f32 0.0, %v542
          %v544 = vpop.f32.mrb[0].mxu0
          %545 = vmatprep.mubr.bf16.mxu0 0
          %546 = vmatmul.mubr.bf16.gmra.mrb[0].mxu0 %v442
          %v547 = vpop.f32.mrb[0].mxu0
          %v548 = vadd.f32 0.0, %v547
          %v549 = vpop.f32.mrb[0].mxu0
          %v550 = vpop.f32.mrb[0].mxu0
          %v551 = vadd.f32 0.0, %v550
          %v552 = vpop.f32.mrb[0].mxu0
          %553 = vmatprep.mubr.bf16.mxu0 0
          %554 = vmatmul.mubr.bf16.gmra.mrb[0].mxu0 %v443
          %v555 = vpop.f32.mrb[0].mxu0
          %v556 = vadd.f32 0.0, %v555
          %v557 = vpop.f32.mrb[0].mxu0
          %v558 = vpop.f32.mrb[0].mxu0
          %v559 = vadd.f32 0.0, %v558
          %v560 = vpop.f32.mrb[0].mxu0
          %561 = vmatprep.mubr.bf16.mxu0 0
          %562 = vmatmul.mubr.bf16.gmra.mrb[0].mxu0 %v444
          %v563 = vpop.f32.mrb[0].mxu0
          %v564 = vadd.f32 0.0, %v563
          %v565 = vpop.f32.mrb[0].mxu0
          %v566 = vpop.f32.mrb[0].mxu0
          %v567 = vadd.f32 0.0, %v566
          %v568 = vpop.f32.mrb[0].mxu0
          %569 = vmatprep.mubr.bf16.mxu0 0
          %570 = vmatmul.mubr.bf16.gmra.mrb[0].mxu0 %v445
          %v571 = vpop.f32.mrb[0].mxu0
          %v572 = vadd.f32 0.0, %v571
          %v573 = vpop.f32.mrb[0].mxu0
          %v574 = vpop.f32.mrb[0].mxu0
          %v575 = vadd.f32 0.0, %v574
          %v576 = vpop.f32.mrb[0].mxu0
          %577 = vmatprep.mubr.bf16.mxu0 0
          %578 = vmatmul.mubr.bf16.gmra.mrb[0].mxu0 %v446
          %v579 = vpop.f32.mrb[0].mxu0
          %v580 = vadd.f32 0.0, %v579
          %v581 = vpop.f32.mrb[0].mxu0
          %v582 = vpop.f32.mrb[0].mxu0
          %v583 = vadd.f32 0.0, %v582
          %v584 = vpop.f32.mrb[0].mxu0
          %585 = vmatprep.mubr.bf16.mxu0 0
          %586 = vmatmul.mubr.bf16.gmra.mrb[0].mxu0 %v447
          %v587 = vpop.f32.mrb[0].mxu0
          %v588 = vadd.f32 0.0, %v587
          %v589 = vpop.f32.mrb[0].mxu0
          %v590 = vpop.f32.mrb[0].mxu0
          %v591 = vadd.f32 0.0, %v590
          %v592 = vpop.f32.mrb[0].mxu0
          %593 = vmatprep.mubr.bf16.mxu0 0
          %594 = vmatmul.mubr.bf16.gmra.mrb[0].mxu0 %v448
          %v595 = vpop.f32.mrb[0].mxu0
          %v596 = vadd.f32 0.0, %v595
          %v597 = vpop.f32.mrb[0].mxu0
          %v598 = vpop.f32.mrb[0].mxu0
          %v599 = vadd.f32 0.0, %v598
          %v600 = vpop.f32.mrb[0].mxu0
          %601 = vdwg.mxu0
          %v602 = vadd.f32 %v377, %v540
          %v603 = vadd.f32 %v378, %v543
          %v604 = vadd.f32 %v379, %v548
          %v605 = vadd.f32 %v380, %v551
          %v606 = vadd.f32 %v381, %v556
          %v607 = vadd.f32 %v382, %v559
          %v608 = vadd.f32 %v383, %v564
          %v609 = vadd.f32 %v384, %v567
          %v610 = vadd.f32 %v385, %v572
          %v611 = vadd.f32 %v386, %v575
          %v612 = vadd.f32 %v387, %v580
          %v613 = vadd.f32 %v388, %v583
          %v614 = vadd.f32 %v389, %v588
          %v615 = vadd.f32 %v390, %v591
          %v616 = vadd.f32 %v391, %v596
          %v617 = vadd.f32 %v392, %v599
          %618 = vst [vmem:[#allocation2] sm:$0xff] %v602
          %619 = vst [vmem:[#allocation2 + $0x8] sm:$0xff] %v603
          %620 = vst [vmem:[#allocation2 + $0x10] sm:$0xff] %v604
          %621 = vst [vmem:[#allocation2 + $0x18] sm:$0xff] %v605
          %622 = vst [vmem:[#allocation2 + $0x20] sm:$0xff] %v606
          %623 = vst [vmem:[#allocation2 + $0x28] sm:$0xff] %v607
          %624 = vst [vmem:[#allocation2 + $0x30] sm:$0xff] %v608
          %625 = vst [vmem:[#allocation2 + $0x38] sm:$0xff] %v609
          %626 = vst [vmem:[#allocation2 + $0x40] sm:$0xff] %v610
          %627 = vst [vmem:[#allocation2 + $0x48] sm:$0xff] %v611
          %628 = vst [vmem:[#allocation2 + $0x50] sm:$0xff] %v612
          %629 = vst [vmem:[#allocation2 + $0x58] sm:$0xff] %v613
          %630 = vst [vmem:[#allocation2 + $0x60] sm:$0xff] %v614
          %631 = vst [vmem:[#allocation2 + $0x68] sm:$0xff] %v615
          %632 = vst [vmem:[#allocation2 + $0x70] sm:$0xff] %v616
          %633 = vst [vmem:[#allocation2 + $0x78] sm:$0xff] %v617
        $region64: #{tpu_custom_call.1} parent=39 // pred_fallthru
          _
        %p634 = scmp.eq.s32.totalorder %s39, 1
        // Predicated region
        $region65: #{tpu_custom_call.1} parent=39 // pred_check
          %p635 = pneg %p634
        $region66: #{tpu_custom_call.1} parent=39 // pred_check_branch
          %637 = sbr.rel (%p635) target = $region68
        $region67: #{tpu_custom_call.1} parent=39 // pred_region
          %v638 = vld [vmem:[#allocation2] sm:$0xff]
          %v639 = vld [vmem:[#allocation2 + $0x8] sm:$0xff]
          %v640 = vld [vmem:[#allocation2 + $0x10] sm:$0xff]
          %v641 = vld [vmem:[#allocation2 + $0x18] sm:$0xff]
          %v642 = vld [vmem:[#allocation2 + $0x20] sm:$0xff]
          %v643 = vld [vmem:[#allocation2 + $0x28] sm:$0xff]
          %v644 = vld [vmem:[#allocation2 + $0x30] sm:$0xff]
          %v645 = vld [vmem:[#allocation2 + $0x38] sm:$0xff]
          %v646 = vld [vmem:[#allocation2 + $0x40] sm:$0xff]
          %v647 = vld [vmem:[#allocation2 + $0x48] sm:$0xff]
          %v648 = vld [vmem:[#allocation2 + $0x50] sm:$0xff]
          %v649 = vld [vmem:[#allocation2 + $0x58] sm:$0xff]
          %v650 = vld [vmem:[#allocation2 + $0x60] sm:$0xff]
          %v651 = vld [vmem:[#allocation2 + $0x68] sm:$0xff]
          %v652 = vld [vmem:[#allocation2 + $0x70] sm:$0xff]
          %v653 = vld [vmem:[#allocation2 + $0x78] sm:$0xff]
          %v654 = vpack.c.bf16 %v639, %v638
          %v655 = vpack.c.bf16 %v641, %v640
          %v656 = vpack.c.bf16 %v643, %v642
          %v657 = vpack.c.bf16 %v645, %v644
          %v658 = vpack.c.bf16 %v647, %v646
          %v659 = vpack.c.bf16 %v649, %v648
          %v660 = vpack.c.bf16 %v651, %v650
          %v661 = vpack.c.bf16 %v653, %v652
          %v662 = vld [vmem:[#allocation11] sm:$0xf]
          %v663 = vld [vmem:[#allocation11 + $0x4] sm:$0xf]
          %v664 = vld [vmem:[#allocation11 + $0x8] sm:$0xf]
          %v665 = vld [vmem:[#allocation11 + $0xc] sm:$0xf]
          %v666 = vld [vmem:[#allocation11 + $0x10] sm:$0xf]
          %v667 = vld [vmem:[#allocation11 + $0x14] sm:$0xf]
          %v668 = vld [vmem:[#allocation11 + $0x18] sm:$0xf]
          %v669 = vld [vmem:[#allocation11 + $0x1c] sm:$0xf]
          %v670 = vld [vmem:[#allocation11 + $0x20] sm:$0xf]
          %v671 = vld [vmem:[#allocation11 + $0x24] sm:$0xf]
          %v672 = vld [vmem:[#allocation11 + $0x28] sm:$0xf]
          %v673 = vld [vmem:[#allocation11 + $0x2c] sm:$0xf]
          %v674 = vld [vmem:[#allocation11 + $0x30] sm:$0xf]
          %v675 = vld [vmem:[#allocation11 + $0x34] sm:$0xf]
          %v676 = vld [vmem:[#allocation11 + $0x38] sm:$0xf]
          %v677 = vld [vmem:[#allocation11 + $0x3c] sm:$0xf]
          %v678 = vld [vmem:[%s5] sm:$0x1]
          %v680 = vlaneseq
          %v681 = vshrl.u32 %v680, 7
          %v682 = vsub.s32 0, %v681
          %v683 = vrot.slane %v678, %v682
          %v701 = vunpack.c.l.b16 %v662
          %v702 = vunpack.c.l.b16 %v663
          %v703 = vunpack.c.l.b16 %v664
          %v704 = vunpack.c.l.b16 %v665
          %v705 = vunpack.c.l.b16 %v666
          %v706 = vunpack.c.l.b16 %v667
          %v707 = vunpack.c.l.b16 %v668
          %v708 = vunpack.c.l.b16 %v669
          %v709 = vunpack.c.l.b16 %v670
          %v710 = vunpack.c.l.b16 %v671
          %v711 = vunpack.c.l.b16 %v672
          %v712 = vunpack.c.l.b16 %v673
          %v713 = vunpack.c.l.b16 %v674
          %v714 = vunpack.c.l.b16 %v675
          %v715 = vunpack.c.l.b16 %v676
          %v716 = vunpack.c.l.b16 %v677
          %v717 = vpack.c.b16 %v702, %v701
          %v718 = vpack.c.b16 %v704, %v703
          %v719 = vpack.c.b16 %v706, %v705
          %v720 = vpack.c.b16 %v708, %v707
          %v721 = vpack.c.b16 %v710, %v709
          %v722 = vpack.c.b16 %v712, %v711
          %v723 = vpack.c.b16 %v714, %v713
          %v724 = vpack.c.b16 %v716, %v715
          %733 = vmatprep.subr.bf16.mxu0 0
          %734 = vmatpush1.bf16.msra.mxu0 %v717
          %735 = vmatprep.subr.bf16.mxu0 0
          %736 = vmatpush1.bf16.msra.mxu0 %v718
          %737 = vmatprep.subr.bf16.mxu0 0
          %738 = vmatpush1.bf16.msra.mxu0 %v719
          %739 = vmatprep.subr.bf16.mxu0 0
          %740 = vmatpush1.bf16.msra.mxu0 %v720
          %741 = vmatprep.subr.bf16.mxu0 0
          %742 = vmatpush1.bf16.msra.mxu0 %v721
          %743 = vmatprep.subr.bf16.mxu0 0
          %744 = vmatpush1.bf16.msra.mxu0 %v722
          %745 = vmatprep.subr.bf16.mxu0 0
          %746 = vmatpush1.bf16.msra.mxu0 %v723
          %747 = vmatprep.subr.bf16.mxu0 0
          %748 = vmatpush1.bf16.msra.mxu0 %v724
          %749 = vmatprep.subr.bf16.mxu0 0
          %750 = vmatpush1.bf16.msra.mxu0 0
          %751 = vmatprep.subr.bf16.mxu0 0
          %752 = vmatpush1.bf16.msra.mxu0 0
          %753 = vmatprep.subr.bf16.mxu0 0
          %754 = vmatpush1.bf16.msra.mxu0 0
          %755 = vmatprep.subr.bf16.mxu0 0
          %756 = vmatpush1.bf16.msra.mxu0 0
          %757 = vmatprep.subr.bf16.mxu0 0
          %758 = vmatpush1.bf16.msra.mxu0 0
          %759 = vmatprep.subr.bf16.mxu0 0
          %760 = vmatpush1.bf16.msra.mxu0 0
          %761 = vmatprep.subr.bf16.mxu0 0
          %762 = vmatpush1.bf16.msra.mxu0 0
          %763 = vmatprep.subr.bf16.mxu0 0
          %764 = vmatpush1.bf16.msra.mxu0 0
          %765 = vmatprep.mubr.bf16.mxu0 0
          %766 = vmatmul.mubr.bf16.gmra.mrb[0].mxu0 %v654
          %v767 = vpop.f32.mrb[0].mxu0
          %v768 = vadd.f32 %v683, %v767
          %v769 = vpop.f32.mrb[0].mxu0
          %v770 = vpop.f32.mrb[0].mxu0
          %v771 = vadd.f32 %v683, %v770
          %v772 = vpop.f32.mrb[0].mxu0
          %773 = vmatprep.mubr.bf16.mxu0 0
          %774 = vmatmul.mubr.bf16.gmra.mrb[0].mxu0 %v655
          %v775 = vpop.f32.mrb[0].mxu0
          %v776 = vadd.f32 %v683, %v775
          %v777 = vpop.f32.mrb[0].mxu0
          %v778 = vpop.f32.mrb[0].mxu0
          %v779 = vadd.f32 %v683, %v778
          %v780 = vpop.f32.mrb[0].mxu0
          %781 = vmatprep.mubr.bf16.mxu0 0
          %782 = vmatmul.mubr.bf16.gmra.mrb[0].mxu0 %v656
          %v783 = vpop.f32.mrb[0].mxu0
          %v784 = vadd.f32 %v683, %v783
          %v785 = vpop.f32.mrb[0].mxu0
          %v786 = vpop.f32.mrb[0].mxu0
          %v787 = vadd.f32 %v683, %v786
          %v788 = vpop.f32.mrb[0].mxu0
          %789 = vmatprep.mubr.bf16.mxu0 0
          %790 = vmatmul.mubr.bf16.gmra.mrb[0].mxu0 %v657
          %v791 = vpop.f32.mrb[0].mxu0
          %v792 = vadd.f32 %v683, %v791
          %v793 = vpop.f32.mrb[0].mxu0
          %v794 = vpop.f32.mrb[0].mxu0
          %v795 = vadd.f32 %v683, %v794
          %v796 = vpop.f32.mrb[0].mxu0
          %797 = vmatprep.mubr.bf16.mxu0 0
          %798 = vmatmul.mubr.bf16.gmra.mrb[0].mxu0 %v658
          %v799 = vpop.f32.mrb[0].mxu0
          %v800 = vadd.f32 %v683, %v799
          %v801 = vpop.f32.mrb[0].mxu0
          %v802 = vpop.f32.mrb[0].mxu0
          %v803 = vadd.f32 %v683, %v802
          %v804 = vpop.f32.mrb[0].mxu0
          %805 = vmatprep.mubr.bf16.mxu0 0
          %806 = vmatmul.mubr.bf16.gmra.mrb[0].mxu0 %v659
          %v807 = vpop.f32.mrb[0].mxu0
          %v808 = vadd.f32 %v683, %v807
          %v809 = vpop.f32.mrb[0].mxu0
          %v810 = vpop.f32.mrb[0].mxu0
          %v811 = vadd.f32 %v683, %v810
          %v812 = vpop.f32.mrb[0].mxu0
          %813 = vmatprep.mubr.bf16.mxu0 0
          %814 = vmatmul.mubr.bf16.gmra.mrb[0].mxu0 %v660
          %v815 = vpop.f32.mrb[0].mxu0
          %v816 = vadd.f32 %v683, %v815
          %v817 = vpop.f32.mrb[0].mxu0
          %v818 = vpop.f32.mrb[0].mxu0
          %v819 = vadd.f32 %v683, %v818
          %v820 = vpop.f32.mrb[0].mxu0
          %821 = vmatprep.mubr.bf16.mxu0 0
          %822 = vmatmul.mubr.bf16.gmra.mrb[0].mxu0 %v661
          %v823 = vpop.f32.mrb[0].mxu0
          %v824 = vadd.f32 %v683, %v823
          %v825 = vpop.f32.mrb[0].mxu0
          %v826 = vpop.f32.mrb[0].mxu0
          %v827 = vadd.f32 %v683, %v826
          %v828 = vpop.f32.mrb[0].mxu0
          %829 = vdwg.mxu0
          %v830 = vmax.f32 %v768, 0.0
          %v831 = vmax.f32 %v771, 0.0
          %v832 = vmax.f32 %v776, 0.0
          %v833 = vmax.f32 %v779, 0.0
          %v834 = vmax.f32 %v784, 0.0
          %v835 = vmax.f32 %v787, 0.0
          %v836 = vmax.f32 %v792, 0.0
          %v837 = vmax.f32 %v795, 0.0
          %v838 = vmax.f32 %v800, 0.0
          %v839 = vmax.f32 %v803, 0.0
          %v840 = vmax.f32 %v808, 0.0
          %v841 = vmax.f32 %v811, 0.0
          %v842 = vmax.f32 %v816, 0.0
          %v843 = vmax.f32 %v819, 0.0
          %v844 = vmax.f32 %v824, 0.0
          %v845 = vmax.f32 %v827, 0.0
          %v846 = vpack.c.bf16 %v831, %v830
          %v847 = vpack.c.bf16 %v833, %v832
          %v848 = vpack.c.bf16 %v835, %v834
          %v849 = vpack.c.bf16 %v837, %v836
          %v850 = vpack.c.bf16 %v839, %v838
          %v851 = vpack.c.bf16 %v841, %v840
          %v852 = vpack.c.bf16 %v843, %v842
          %v853 = vpack.c.bf16 %v845, %v844
          %v854 = vld [vmem:[#allocation12] sm:$0xf]
          %v855 = vld [vmem:[#allocation12 + $0x4] sm:$0xf]
          %v856 = vld [vmem:[#allocation12 + $0x8] sm:$0xf]
          %v857 = vld [vmem:[#allocation12 + $0xc] sm:$0xf]
          %v858 = vld [vmem:[#allocation12 + $0x10] sm:$0xf]
          %v859 = vld [vmem:[#allocation12 + $0x14] sm:$0xf]
          %v860 = vld [vmem:[#allocation12 + $0x18] sm:$0xf]
          %v861 = vld [vmem:[#allocation12 + $0x1c] sm:$0xf]
          %v862 = vld [vmem:[#allocation12 + $0x20] sm:$0xf]
          %v863 = vld [vmem:[#allocation12 + $0x24] sm:$0xf]
          %v864 = vld [vmem:[#allocation12 + $0x28] sm:$0xf]
          %v865 = vld [vmem:[#allocation12 + $0x2c] sm:$0xf]
          %v866 = vld [vmem:[#allocation12 + $0x30] sm:$0xf]
          %v867 = vld [vmem:[#allocation12 + $0x34] sm:$0xf]
          %v868 = vld [vmem:[#allocation12 + $0x38] sm:$0xf]
          %v869 = vld [vmem:[#allocation12 + $0x3c] sm:$0xf]
          %v886 = vunpack.c.l.b16 %v854
          %v887 = vunpack.c.l.b16 %v855
          %v888 = vunpack.c.l.b16 %v856
          %v889 = vunpack.c.l.b16 %v857
          %v890 = vunpack.c.l.b16 %v858
          %v891 = vunpack.c.l.b16 %v859
          %v892 = vunpack.c.l.b16 %v860
          %v893 = vunpack.c.l.b16 %v861
          %v894 = vunpack.c.l.b16 %v862
          %v895 = vunpack.c.l.b16 %v863
          %v896 = vunpack.c.l.b16 %v864
          %v897 = vunpack.c.l.b16 %v865
          %v898 = vunpack.c.l.b16 %v866
          %v899 = vunpack.c.l.b16 %v867
          %v900 = vunpack.c.l.b16 %v868
          %v901 = vunpack.c.l.b16 %v869
          %v902 = vpack.c.b16 %v887, %v886
          %v903 = vpack.c.b16 %v889, %v888
          %v904 = vpack.c.b16 %v891, %v890
          %v905 = vpack.c.b16 %v893, %v892
          %v906 = vpack.c.b16 %v895, %v894
          %v907 = vpack.c.b16 %v897, %v896
          %v908 = vpack.c.b16 %v899, %v898
          %v909 = vpack.c.b16 %v901, %v900
          %918 = vmatprep.subr.bf16.mxu0 0
          %919 = vmatpush1.bf16.msra.mxu0 %v902
          %920 = vmatprep.subr.bf16.mxu0 0
          %921 = vmatpush1.bf16.msra.mxu0 %v903
          %922 = vmatprep.subr.bf16.mxu0 0
          %923 = vmatpush1.bf16.msra.mxu0 %v904
          %924 = vmatprep.subr.bf16.mxu0 0
          %925 = vmatpush1.bf16.msra.mxu0 %v905
          %926 = vmatprep.subr.bf16.mxu0 0
          %927 = vmatpush1.bf16.msra.mxu0 %v906
          %928 = vmatprep.subr.bf16.mxu0 0
          %929 = vmatpush1.bf16.msra.mxu0 %v907
          %930 = vmatprep.subr.bf16.mxu0 0
          %931 = vmatpush1.bf16.msra.mxu0 %v908
          %932 = vmatprep.subr.bf16.mxu0 0
          %933 = vmatpush1.bf16.msra.mxu0 %v909
          %934 = vmatprep.subr.bf16.mxu0 0
          %935 = vmatpush1.bf16.msra.mxu0 0
          %936 = vmatprep.subr.bf16.mxu0 0
          %937 = vmatpush1.bf16.msra.mxu0 0
          %938 = vmatprep.subr.bf16.mxu0 0
          %939 = vmatpush1.bf16.msra.mxu0 0
          %940 = vmatprep.subr.bf16.mxu0 0
          %941 = vmatpush1.bf16.msra.mxu0 0
          %942 = vmatprep.subr.bf16.mxu0 0
          %943 = vmatpush1.bf16.msra.mxu0 0
          %944 = vmatprep.subr.bf16.mxu0 0
          %945 = vmatpush1.bf16.msra.mxu0 0
          %946 = vmatprep.subr.bf16.mxu0 0
          %947 = vmatpush1.bf16.msra.mxu0 0
          %948 = vmatprep.subr.bf16.mxu0 0
          %949 = vmatpush1.bf16.msra.mxu0 0
          %950 = vmatprep.mubr.bf16.mxu0 0
          %951 = vmatmul.mubr.bf16.gmra.mrb[0].mxu0 %v846
          %v952 = vpop.f32.mrb[0].mxu0
          %v953 = vadd.f32 0.0, %v952
          %v954 = vpop.f32.mrb[0].mxu0
          %v955 = vpop.f32.mrb[0].mxu0
          %v956 = vadd.f32 0.0, %v955
          %v957 = vpop.f32.mrb[0].mxu0
          %958 = vmatprep.mubr.bf16.mxu0 0
          %959 = vmatmul.mubr.bf16.gmra.mrb[0].mxu0 %v847
          %v960 = vpop.f32.mrb[0].mxu0
          %v961 = vadd.f32 0.0, %v960
          %v962 = vpop.f32.mrb[0].mxu0
          %v963 = vpop.f32.mrb[0].mxu0
          %v964 = vadd.f32 0.0, %v963
          %v965 = vpop.f32.mrb[0].mxu0
          %966 = vmatprep.mubr.bf16.mxu0 0
          %967 = vmatmul.mubr.bf16.gmra.mrb[0].mxu0 %v848
          %v968 = vpop.f32.mrb[0].mxu0
          %v969 = vadd.f32 0.0, %v968
          %v970 = vpop.f32.mrb[0].mxu0
          %v971 = vpop.f32.mrb[0].mxu0
          %v972 = vadd.f32 0.0, %v971
          %v973 = vpop.f32.mrb[0].mxu0
          %974 = vmatprep.mubr.bf16.mxu0 0
          %975 = vmatmul.mubr.bf16.gmra.mrb[0].mxu0 %v849
          %v976 = vpop.f32.mrb[0].mxu0
          %v977 = vadd.f32 0.0, %v976
          %v978 = vpop.f32.mrb[0].mxu0
          %v979 = vpop.f32.mrb[0].mxu0
          %v980 = vadd.f32 0.0, %v979
          %v981 = vpop.f32.mrb[0].mxu0
          %982 = vmatprep.mubr.bf16.mxu0 0
          %983 = vmatmul.mubr.bf16.gmra.mrb[0].mxu0 %v850
          %v984 = vpop.f32.mrb[0].mxu0
          %v985 = vadd.f32 0.0, %v984
          %v986 = vpop.f32.mrb[0].mxu0
          %v987 = vpop.f32.mrb[0].mxu0
          %v988 = vadd.f32 0.0, %v987
          %v989 = vpop.f32.mrb[0].mxu0
          %990 = vmatprep.mubr.bf16.mxu0 0
          %991 = vmatmul.mubr.bf16.gmra.mrb[0].mxu0 %v851
          %v992 = vpop.f32.mrb[0].mxu0
          %v993 = vadd.f32 0.0, %v992
          %v994 = vpop.f32.mrb[0].mxu0
          %v995 = vpop.f32.mrb[0].mxu0
          %v996 = vadd.f32 0.0, %v995
          %v997 = vpop.f32.mrb[0].mxu0
          %998 = vmatprep.mubr.bf16.mxu0 0
          %999 = vmatmul.mubr.bf16.gmra.mrb[0].mxu0 %v852
          %v1000 = vpop.f32.mrb[0].mxu0
          %v1001 = vadd.f32 0.0, %v1000
          %v1002 = vpop.f32.mrb[0].mxu0
          %v1003 = vpop.f32.mrb[0].mxu0
          %v1004 = vadd.f32 0.0, %v1003
          %v1005 = vpop.f32.mrb[0].mxu0
          %1006 = vmatprep.mubr.bf16.mxu0 0
          %1007 = vmatmul.mubr.bf16.gmra.mrb[0].mxu0 %v853
          %v1008 = vpop.f32.mrb[0].mxu0
          %v1009 = vadd.f32 0.0, %v1008
          %v1010 = vpop.f32.mrb[0].mxu0
          %v1011 = vpop.f32.mrb[0].mxu0
          %v1012 = vadd.f32 0.0, %v1011
          %v1013 = vpop.f32.mrb[0].mxu0
          %1014 = vdwg.mxu0
          %v1015 = vpack.c.bf16 %v956, %v953
          %v1016 = vpack.c.bf16 %v964, %v961
          %v1017 = vpack.c.bf16 %v972, %v969
          %v1018 = vpack.c.bf16 %v980, %v977
          %v1019 = vpack.c.bf16 %v988, %v985
          %v1020 = vpack.c.bf16 %v996, %v993
          %v1021 = vpack.c.bf16 %v1004, %v1001
          %v1022 = vpack.c.bf16 %v1012, %v1009
          %v1031 = vunpack.c.l.b16 %v1015
          %v1032 = vunpack.c.h.b16 %v1015
          %v1033 = vunpack.c.l.b16 %v1016
          %v1034 = vunpack.c.h.b16 %v1016
          %v1035 = vunpack.c.l.b16 %v1017
          %v1036 = vunpack.c.h.b16 %v1017
          %v1037 = vunpack.c.l.b16 %v1018
          %v1038 = vunpack.c.h.b16 %v1018
          %v1039 = vunpack.c.l.b16 %v1019
          %v1040 = vunpack.c.h.b16 %v1019
          %v1041 = vunpack.c.l.b16 %v1020
          %v1042 = vunpack.c.h.b16 %v1020
          %v1043 = vunpack.c.l.b16 %v1021
          %v1044 = vunpack.c.h.b16 %v1021
          %v1045 = vunpack.c.l.b16 %v1022
          %v1046 = vunpack.c.h.b16 %v1022
          %v1047 = vpack.c.b16 %v1031, %v1031
          %v1048 = vpack.c.b16 %v1032, %v1032
          %v1049 = vpack.c.b16 %v1033, %v1033
          %v1050 = vpack.c.b16 %v1034, %v1034
          %v1051 = vpack.c.b16 %v1035, %v1035
          %v1052 = vpack.c.b16 %v1036, %v1036
          %v1053 = vpack.c.b16 %v1037, %v1037
          %v1054 = vpack.c.b16 %v1038, %v1038
          %v1055 = vpack.c.b16 %v1039, %v1039
          %v1056 = vpack.c.b16 %v1040, %v1040
          %v1057 = vpack.c.b16 %v1041, %v1041
          %v1058 = vpack.c.b16 %v1042, %v1042
          %v1059 = vpack.c.b16 %v1043, %v1043
          %v1060 = vpack.c.b16 %v1044, %v1044
          %v1061 = vpack.c.b16 %v1045, %v1045
          %v1062 = vpack.c.b16 %v1046, %v1046
          %1079 = vst [vmem:[%s321] sm:$0xf] %v1047
          %1080 = vst [vmem:[%s321 + $0x4] sm:$0xf] %v1048
          %1081 = vst [vmem:[%s321 + $0x8] sm:$0xf] %v1049
          %1082 = vst [vmem:[%s321 + $0xc] sm:$0xf] %v1050
          %1083 = vst [vmem:[%s321 + $0x10] sm:$0xf] %v1051
          %1084 = vst [vmem:[%s321 + $0x14] sm:$0xf] %v1052
          %1085 = vst [vmem:[%s321 + $0x18] sm:$0xf] %v1053
          %1086 = vst [vmem:[%s321 + $0x1c] sm:$0xf] %v1054
          %1087 = vst [vmem:[%s321 + $0x20] sm:$0xf] %v1055
          %1088 = vst [vmem:[%s321 + $0x24] sm:$0xf] %v1056
          %1089 = vst [vmem:[%s321 + $0x28] sm:$0xf] %v1057
          %1090 = vst [vmem:[%s321 + $0x2c] sm:$0xf] %v1058
          %1091 = vst [vmem:[%s321 + $0x30] sm:$0xf] %v1059
          %1092 = vst [vmem:[%s321 + $0x34] sm:$0xf] %v1060
          %1093 = vst [vmem:[%s321 + $0x38] sm:$0xf] %v1061
          %1094 = vst [vmem:[%s321 + $0x3c] sm:$0xf] %v1062
        $region68: #{tpu_custom_call.1} parent=39 // pred_fallthru
          _
        %s1095 = sand.u32 %s172, 1
        %s1096 = scalar_lea.sflag [#allocation8], %s1095
        %s1097 = sand.u32 %s172, 1
        %s1098 = smul.addr %s1097, 64
        %s1099 = scalar_lea.vmem [#allocation14], %s1098
        // Predicated region
        $region69: #{tpu_custom_call.1} parent=39 // pred_check
          %p1100 = pneg %p182
        $region70: #{tpu_custom_call.1} parent=39 // pred_check_branch
          %1102 = sbr.rel (%p1100) target = $region72
        $region71: #{tpu_custom_call.1} parent=39 // pred_region
          %s1103 = smul.u32 16, %s38
          %s1105 = ssub.s32 1024, 1024
          %1106 = vsyncadd %s1096, %s1105
          %s1107 = smul.addr %s1103, 64
          %s1108 = scalar_lea.hbm %s7, %s1107
          %s1109 = sshll.u32 %s1099, 4
          %s1110 = int_to_ptr.vmem [resolvable:$true] %s1109
          %1115 = dma.vmem_to_hbm [thread:$0]  %s1110, 1024, %s1108, %s1096, 64, 64, 4
        $region72: #{tpu_custom_call.1} parent=39 // pred_fallthru
          _
      $region40: #{tpu_custom_call.1} parent=5 // pred_fallthru
        _
      %p1116 = scmp.le.s32.totalorder 2, %s29
      // Predicated region
      $region73: #{tpu_custom_call.1} parent=5 // pred_check
        %p1117 = pneg %p1116
      $region74: #{tpu_custom_call.1} parent=5 // pred_check_branch
        %1119 = sbr.rel (%p1117) target = $region76
      $region75: #{tpu_custom_call.1} parent=5 // pred_region
        %s1120 = ssub.s32 %s29, 2
        // Predicated region
        $region77: #{tpu_custom_call.1} parent=75 // pred_check
          %p1121 = pneg %p188
        $region78: #{tpu_custom_call.1} parent=75 // pred_check_branch
          %1123 = sbr.rel (%p1121) target = $region80
        $region79: #{tpu_custom_call.1} parent=75 // pred_region
          %s1124 = sand.u32 %s173, 1
          %s1125 = scalar_lea.sflag [#allocation8], %s1124
          %s1126 = sand.u32 %s173, 1
          %s1127 = smul.addr %s1126, 64
          %s1128 = scalar_lea.vmem [#allocation14], %s1127
          %1129 = dma.done %s1125, 1024
        $region80: #{tpu_custom_call.1} parent=75 // pred_fallthru
          _
      $region76: #{tpu_custom_call.1} parent=5 // pred_fallthru
        _
    $region6: #{tpu_custom_call.1} parent=1 // loop_footer
      %s33 = sadd.s32 1, %s29
    $region7: #{tpu_custom_call.1} parent=1 // loop_footer_branch
      %28 = sbr.rel target = $region3
    $region8: #{tpu_custom_call.1} parent=1 // loop_exit
      _
    %1130 = vsyncpa [#allocation7], 1
    %s1131 = scalar_lea.sflag [#allocation7], 1
    %1132 = vsyncpa %s1131, 1
    %1133 = vsyncpa [#allocation10], 1
    %1134 = vsyncpa [#allocation13], 1
    %1135 = vsyncpa [#allocation8], 1
    %s1136 = scalar_lea.sflag [#allocation8], 1
    %1137 = vsyncpa %s1136, 1

</llo_original>
